<compile_context>
chip_gen: v7x
topology: tpu7x:2x2x1
jax: 0.10.0
libtpu: 0.0.40
codegen_flags: <defaults>
</compile_context>

<pallas_src>
import functools
import math

import jax
import jax.numpy as jnp
from jax.experimental import pallas as pl
from jax.experimental.pallas import tpu as pltpu


def _round_up(x, m):
    return ((x + m - 1) // m) * m


def _complex_ln_kernel(xr_ref, xi_ref, wb_ref, or_ref, oi_ref, *, eps, f_true):
    # xr/xi tiles: (TR, F); wb: (6, F) = [w00, w01, w10, w11, b0, b1]
    xr = xr_ref[...]
    xi = xi_ref[...]
    inv_f = 1.0 / float(f_true)

    # --- single-pass raw moments over the feature (lane) axis ---
    sum_r = jnp.sum(xr, axis=-1, keepdims=True)
    sum_i = jnp.sum(xi, axis=-1, keepdims=True)
    sum_rr = jnp.sum(xr * xr, axis=-1, keepdims=True)
    sum_ii = jnp.sum(xi * xi, axis=-1, keepdims=True)
    sum_ri = jnp.sum(xr * xi, axis=-1, keepdims=True)

    mean_r = sum_r * inv_f
    mean_i = sum_i * inv_f
    # biased 2x2 covariance (E[x^2] - mu^2 form), eps on the diagonal only
    var_r = sum_rr * inv_f - mean_r * mean_r + eps
    var_i = sum_ii * inv_f - mean_i * mean_i + eps
    cov = sum_ri * inv_f - mean_r * mean_i

    # inverse matrix square root of [[var_r, cov], [cov, var_i]]
    det = jnp.maximum(var_r * var_i - cov * cov, eps * eps)  # strictly positive floor
    sqrdet = jnp.sqrt(det)
    # 1 / (sqrt(det) * sqrt(var_r + 2*sqrt(det) + var_i)) as a single EUP rsqrt
    inv_denom = jax.lax.rsqrt(det * (var_r + var_i + 2.0 * sqrdet))
    p = (var_i + sqrdet) * inv_denom
    s = (var_r + sqrdet) * inv_denom
    q = -cov * inv_denom  # symmetric off-diagonal

    # whitened real / imag (center only once, in the output pass)
    xr_c = xr - mean_r
    xi_c = xi - mean_i
    wr = xr_c * p + xi_c * q
    wi = xr_c * q + xi_c * s

    # elementwise 2x2 affine + bias (per-feature broadcast over rows)
    w00 = wb_ref[0:1, :]
    w01 = wb_ref[1:2, :]
    w10 = wb_ref[2:3, :]
    w11 = wb_ref[3:4, :]
    b0 = wb_ref[4:5, :]
    b1 = wb_ref[5:6, :]

    or_ref[...] = (wr * w00 + wi * w01 + b0).astype(or_ref.dtype)
    oi_ref[...] = (wr * w10 + wi * w11 + b1).astype(oi_ref.dtype)


def complex_layer_norm(x, normalized_shape, weight, bias, eps=1e-5):
    """x: complex array, normalized over the trailing `normalized_shape` dims.
    weight: (2, 2, *normalized_shape) float or None, bias: (2, *normalized_shape) or None."""
    normalized_shape = tuple(int(d) for d in normalized_shape)
    D = len(normalized_shape)
    assert x.shape[-D:] == normalized_shape, "normalized_shape must match trailing dims"

    lead_shape = x.shape[:-D]
    R = int(math.prod(lead_shape)) if lead_shape else 1
    F = int(math.prod(normalized_shape))

    # Lane footprint of one row inside VMEM (HBM stays F wide; no host padding).
    f_vmem = _round_up(F, 128)

    # Per-core VMEM capacity: 64 MiB on v7x, 128 MiB on v5e/v6e.
    try:
        vmem_cap = int(pltpu.get_tpu_info().vmem_capacity_bytes)
    except Exception:  # conservative fallback if the query is unavailable
        vmem_cap = 64 << 20

    # ---- row-tile sizing: (2 in + 2 out) double-buffered f32 tiles ----
    budget_bytes = max(8 << 20, int(vmem_cap * 0.40))
    tr_cap = budget_bytes // (32 * f_vmem)
    tr_cap = max(8, min(4096, (tr_cap // 8) * 8))

    TR = min(tr_cap, _round_up(R, 8))
    grid = pl.cdiv(R, TR)
    if grid == 1 and R > 8:
        # at least 2 steps: pipeline overlap + both v7x TensorCores get work
        TR = _round_up(pl.cdiv(R, 2), 8)
        grid = pl.cdiv(R, TR)
    elif grid > 1 and grid % 2 == 1:
        # nudge to an even step count so v7x's 2 cores split the axis evenly
        tr_even = _round_up(pl.cdiv(R, grid + 1), 8)
        if pl.cdiv(R, tr_even) % 2 == 0:
            TR = tr_even
            grid = pl.cdiv(R, tr_even)

    # Request only the pipeline working set (+ margin), never the full physical VMEM.
    working_set = 32 * TR * f_vmem + 2 * 8 * f_vmem * 4  # io tiles + wb double-buffer
    vmem_limit = max(16 << 20, min(working_set + (4 << 20), vmem_cap * 3 // 4))

    # ---- planar f32 planes (single fused XLA pass each way, no padding) ----
    xr = jnp.real(x).astype(jnp.float32).reshape(R, F)
    xi = jnp.imag(x).astype(jnp.float32).reshape(R, F)

    # ---- pack affine params into one (6, F) operand: [w00, w01, w10, w11, b0, b1] ----
    if weight is None:
        w_flat = jnp.concatenate(
            [jnp.ones((1, F), jnp.float32), jnp.zeros((2, F), jnp.float32),
             jnp.ones((1, F), jnp.float32)], axis=0)
    else:
        w_flat = jnp.asarray(weight, jnp.float32).reshape(4, F)
    if bias is None:
        b_flat = jnp.zeros((2, F), jnp.float32)
    else:
        b_flat = jnp.asarray(bias, jnp.float32).reshape(2, F)
    wb = jnp.concatenate([w_flat, b_flat], axis=0)  # (6, F)

    kernel = functools.partial(_complex_ln_kernel, eps=float(eps), f_true=F)

    out_r, out_i = pl.pallas_call(
        kernel,
        out_shape=(
            jax.ShapeDtypeStruct((R, F), jnp.float32),
            jax.ShapeDtypeStruct((R, F), jnp.float32),
        ),
        grid=(grid,),
        in_specs=[
            pl.BlockSpec((TR, F), lambda i: (i, 0)),
            pl.BlockSpec((TR, F), lambda i: (i, 0)),
            pl.BlockSpec((6, F), lambda i: (0, 0)),
        ],
        out_specs=[
            pl.BlockSpec((TR, F), lambda i: (i, 0)),
            pl.BlockSpec((TR, F), lambda i: (i, 0)),
        ],
        compiler_params=pltpu.CompilerParams(
            dimension_semantics=("parallel",),
            vmem_limit_bytes=int(vmem_limit),
        ),
    )(xr, xi, wb)

    out = jax.lax.complex(out_r, out_i).astype(jnp.complex64)
    return out.reshape(*lead_shape, *normalized_shape)


def ref_complex_layer_norm(x, normalized_shape, weight, bias, eps=1e-5):
    """Pure-JAX reference mirroring complextorch whiten2x2 layer-norm (two-pass)."""
    D = len(normalized_shape)
    axes = tuple(range(x.ndim - D, x.ndim))
    xr = jnp.real(x).astype(jnp.float32)
    xi = jnp.imag(x).astype(jnp.float32)
    xr_c = xr - jnp.mean(xr, axis=axes, keepdims=True)
    xi_c = xi - jnp.mean(xi, axis=axes, keepdims=True)
    var_r = jnp.mean(xr_c * xr_c, axis=axes, keepdims=True) + eps
    var_i = jnp.mean(xi_c * xi_c, axis=axes, keepdims=True) + eps
    cov = jnp.mean(xr_c * xi_c, axis=axes, keepdims=True)
    sqrdet = jnp.sqrt(var_r * var_i - cov * cov)
    denom = sqrdet * jnp.sqrt(var_r + 2.0 * sqrdet + var_i)
    p = (var_i + sqrdet) / denom
    s = (var_r + sqrdet) / denom
    q = -cov / denom
    wr = xr_c * p + xi_c * q
    wi = xr_c * q + xi_c * s
    bshape = (1,) * (x.ndim - D) + tuple(normalized_shape)
    w = jnp.asarray(weight, jnp.float32)
    b = jnp.asarray(bias, jnp.float32)
    w00 = w[0, 0].reshape(bshape)
    w01 = w[0, 1].reshape(bshape)
    w10 = w[1, 0].reshape(bshape)
    w11 = w[1, 1].reshape(bshape)
    b0 = b[0].reshape(bshape)
    b1 = b[1].reshape(bshape)
    out_r = wr * w00 + wi * w01 + b0
    out_i = wr * w10 + wi * w11 + b1
    return (out_r + 1j * out_i).astype(jnp.complex64)


if __name__ == "__main__":
    # Small shapes: batch=2, seq=8, hidden=32; normalized_shape=(32,)
    B, S, H = 2, 8, 32
    normalized_shape = (H,)
    eps = 1e-5

    key = jax.random.PRNGKey(0)
    kr, ki, kw, kb = jax.random.split(key, 4)
    x_real = jax.random.normal(kr, (B, S, H), dtype=jnp.float32)
    x_imag = jax.random.normal(ki, (B, S, H), dtype=jnp.float32)
    x = (x_real + 1j * x_imag).astype(jnp.complex64)

    # Parameter init per LayerNorm.reset_parameters: weight = 1/sqrt(2) * eye(2),
    # bias = 0; plus a small deterministic perturbation to exercise all terms.
    eye_scaled = 0.70710678118 * jnp.eye(2, dtype=jnp.float32)
    weight = eye_scaled.reshape(2, 2, *([1] * len(normalized_shape)))
    weight = jnp.broadcast_to(weight, (2, 2, *normalized_shape)).astype(jnp.float32)
    weight = weight + 0.05 * jax.random.normal(kw, (2, 2, *normalized_shape), jnp.float32)
    bias = jnp.zeros((2, *normalized_shape), jnp.float32)
    bias = bias + 0.05 * jax.random.normal(kb, (2, *normalized_shape), jnp.float32)

    out = complex_layer_norm(x, normalized_shape, weight, bias, eps)
    out = jax.block_until_ready(out)

    ref = ref_complex_layer_norm(x, normalized_shape, weight, bias, eps)
    assert out.shape == x.shape and out.dtype == jnp.complex64
    assert jnp.allclose(jnp.real(out), jnp.real(ref), atol=1e-5, rtol=1e-5)
    assert jnp.allclose(jnp.imag(out), jnp.imag(ref), atol=1e-5, rtol=1e-5)

    print("KERNEL_OK")
</pallas_src>

<mosaic_0001>
module attributes {stable_mosaic.version = 11 : i64} {
  func.func @_complex_ln_kernel(%arg0: i32, %arg1: memref<8x32xf32, #tpu.memory_space<vmem>>, %arg2: memref<8x32xf32, #tpu.memory_space<vmem>>, %arg3: memref<6x32xf32, #tpu.memory_space<vmem>>, %arg4: memref<8x32xf32, #tpu.memory_space<vmem>>, %arg5: memref<8x32xf32, #tpu.memory_space<vmem>>) attributes {dimension_semantics = [#tpu.dimension_semantics<parallel>], iteration_bounds = array<i64: 2>, scalar_prefetch = 0 : i64, scratch_operands = 0 : i64, tpu.core_type = #tpu.core_type<tc>, window_params = [{transform_indices = @transform_0, window_bounds = array<i64: 8, 32>}, {transform_indices = @transform_1, window_bounds = array<i64: 8, 32>}, {pipeline_mode = #tpu.pipeline_mode<synchronous>, transform_indices = @transform_2, window_bounds = array<i64: 6, 32>}, {transform_indices = @transform_3, window_bounds = array<i64: 8, 32>}, {transform_indices = @transform_4, window_bounds = array<i64: 8, 32>}]} {
    %c0 = arith.constant 0 : index
    %c0_0 = arith.constant 0 : index
    %0 = vector.load %arg1[%c0, %c0_0] : memref<8x32xf32, #tpu.memory_space<vmem>>, vector<8x32xf32>
    %c0_1 = arith.constant 0 : index
    %c0_2 = arith.constant 0 : index
    %1 = vector.load %arg2[%c0_1, %c0_2] : memref<8x32xf32, #tpu.memory_space<vmem>>, vector<8x32xf32>
    %cst = arith.constant dense<0.000000e+00> : vector<8xf32>
    %2 = vector.multi_reduction <add>, %0, %cst [1] : vector<8x32xf32> to vector<8xf32>
    %3 = vector.shape_cast %2 : vector<8xf32> to vector<8x1xf32>
    %cst_3 = arith.constant dense<0.000000e+00> : vector<8xf32>
    %4 = vector.multi_reduction <add>, %1, %cst_3 [1] : vector<8x32xf32> to vector<8xf32>
    %5 = vector.shape_cast %4 : vector<8xf32> to vector<8x1xf32>
    %6 = arith.mulf %0, %0 : vector<8x32xf32>
    %cst_4 = arith.constant dense<0.000000e+00> : vector<8xf32>
    %7 = vector.multi_reduction <add>, %6, %cst_4 [1] : vector<8x32xf32> to vector<8xf32>
    %8 = vector.shape_cast %7 : vector<8xf32> to vector<8x1xf32>
    %9 = arith.mulf %1, %1 : vector<8x32xf32>
    %cst_5 = arith.constant dense<0.000000e+00> : vector<8xf32>
    %10 = vector.multi_reduction <add>, %9, %cst_5 [1] : vector<8x32xf32> to vector<8xf32>
    %11 = vector.shape_cast %10 : vector<8xf32> to vector<8x1xf32>
    %12 = arith.mulf %0, %1 : vector<8x32xf32>
    %cst_6 = arith.constant dense<0.000000e+00> : vector<8xf32>
    %13 = vector.multi_reduction <add>, %12, %cst_6 [1] : vector<8x32xf32> to vector<8xf32>
    %14 = vector.shape_cast %13 : vector<8xf32> to vector<8x1xf32>
    %cst_7 = arith.constant 3.125000e-02 : f32
    %15 = vector.broadcast %cst_7 : f32 to vector<8x1xf32>
    %16 = arith.mulf %3, %15 : vector<8x1xf32>
    %cst_8 = arith.constant 3.125000e-02 : f32
    %17 = vector.broadcast %cst_8 : f32 to vector<8x1xf32>
    %18 = arith.mulf %5, %17 : vector<8x1xf32>
    %cst_9 = arith.constant 3.125000e-02 : f32
    %19 = vector.broadcast %cst_9 : f32 to vector<8x1xf32>
    %20 = arith.mulf %8, %19 : vector<8x1xf32>
    %21 = arith.mulf %16, %16 : vector<8x1xf32>
    %22 = arith.subf %20, %21 : vector<8x1xf32>
    %cst_10 = arith.constant 9.99999974E-6 : f32
    %23 = vector.broadcast %cst_10 : f32 to vector<8x1xf32>
    %24 = arith.addf %22, %23 : vector<8x1xf32>
    %cst_11 = arith.constant 3.125000e-02 : f32
    %25 = vector.broadcast %cst_11 : f32 to vector<8x1xf32>
    %26 = arith.mulf %11, %25 : vector<8x1xf32>
    %27 = arith.mulf %18, %18 : vector<8x1xf32>
    %28 = arith.subf %26, %27 : vector<8x1xf32>
    %cst_12 = arith.constant 9.99999974E-6 : f32
    %29 = vector.broadcast %cst_12 : f32 to vector<8x1xf32>
    %30 = arith.addf %28, %29 : vector<8x1xf32>
    %cst_13 = arith.constant 3.125000e-02 : f32
    %31 = vector.broadcast %cst_13 : f32 to vector<8x1xf32>
    %32 = arith.mulf %14, %31 : vector<8x1xf32>
    %33 = arith.mulf %16, %18 : vector<8x1xf32>
    %34 = arith.subf %32, %33 : vector<8x1xf32>
    %35 = arith.mulf %24, %30 : vector<8x1xf32>
    %36 = arith.mulf %34, %34 : vector<8x1xf32>
    %37 = arith.subf %35, %36 : vector<8x1xf32>
    %cst_14 = arith.constant 1.000000e-10 : f32
    %38 = vector.broadcast %cst_14 : f32 to vector<8x1xf32>
    %39 = arith.maximumf %37, %38 : vector<8x1xf32>
    %40 = math.sqrt %39 : vector<8x1xf32>
    %41 = arith.addf %24, %30 : vector<8x1xf32>
    %cst_15 = arith.constant 2.000000e+00 : f32
    %42 = vector.broadcast %cst_15 : f32 to vector<8x1xf32>
    %43 = arith.mulf %42, %40 : vector<8x1xf32>
    %44 = arith.addf %41, %43 : vector<8x1xf32>
    %45 = arith.mulf %39, %44 : vector<8x1xf32>
    %46 = math.rsqrt %45 : vector<8x1xf32>
    %47 = arith.addf %30, %40 : vector<8x1xf32>
    %48 = arith.mulf %47, %46 : vector<8x1xf32>
    %49 = arith.addf %24, %40 : vector<8x1xf32>
    %50 = arith.mulf %49, %46 : vector<8x1xf32>
    %cst_16 = arith.constant 0.000000e+00 : f32
    %51 = vector.broadcast %cst_16 : f32 to vector<8x1xf32>
    %52 = arith.subf %51, %34 : vector<8x1xf32>
    %53 = arith.mulf %52, %46 : vector<8x1xf32>
    %54 = vector.broadcast %16 : vector<8x1xf32> to vector<8x32xf32>
    %55 = arith.subf %0, %54 : vector<8x32xf32>
    %56 = vector.broadcast %18 : vector<8x1xf32> to vector<8x32xf32>
    %57 = arith.subf %1, %56 : vector<8x32xf32>
    %58 = vector.broadcast %48 : vector<8x1xf32> to vector<8x32xf32>
    %59 = arith.mulf %55, %58 : vector<8x32xf32>
    %60 = vector.broadcast %53 : vector<8x1xf32> to vector<8x32xf32>
    %61 = arith.mulf %57, %60 : vector<8x32xf32>
    %62 = arith.addf %59, %61 : vector<8x32xf32>
    %63 = vector.broadcast %53 : vector<8x1xf32> to vector<8x32xf32>
    %64 = arith.mulf %55, %63 : vector<8x32xf32>
    %65 = vector.broadcast %50 : vector<8x1xf32> to vector<8x32xf32>
    %66 = arith.mulf %57, %65 : vector<8x32xf32>
    %67 = arith.addf %64, %66 : vector<8x32xf32>
    %c0_17 = arith.constant 0 : index
    %c0_18 = arith.constant 0 : index
    %68 = vector.load %arg3[%c0_17, %c0_18] : memref<6x32xf32, #tpu.memory_space<vmem>>, vector<1x32xf32>
    %c1 = arith.constant 1 : index
    %c0_19 = arith.constant 0 : index
    %69 = vector.load %arg3[%c1, %c0_19] : memref<6x32xf32, #tpu.memory_space<vmem>>, vector<1x32xf32>
    %c2 = arith.constant 2 : index
    %c0_20 = arith.constant 0 : index
    %70 = vector.load %arg3[%c2, %c0_20] : memref<6x32xf32, #tpu.memory_space<vmem>>, vector<1x32xf32>
    %c3 = arith.constant 3 : index
    %c0_21 = arith.constant 0 : index
    %71 = vector.load %arg3[%c3, %c0_21] : memref<6x32xf32, #tpu.memory_space<vmem>>, vector<1x32xf32>
    %c4 = arith.constant 4 : index
    %c0_22 = arith.constant 0 : index
    %72 = vector.load %arg3[%c4, %c0_22] : memref<6x32xf32, #tpu.memory_space<vmem>>, vector<1x32xf32>
    %c5 = arith.constant 5 : index
    %c0_23 = arith.constant 0 : index
    %73 = vector.load %arg3[%c5, %c0_23] : memref<6x32xf32, #tpu.memory_space<vmem>>, vector<1x32xf32>
    %74 = vector.broadcast %68 : vector<1x32xf32> to vector<8x32xf32>
    %75 = arith.mulf %62, %74 : vector<8x32xf32>
    %76 = vector.broadcast %69 : vector<1x32xf32> to vector<8x32xf32>
    %77 = arith.mulf %67, %76 : vector<8x32xf32>
    %78 = arith.addf %75, %77 : vector<8x32xf32>
    %79 = vector.broadcast %72 : vector<1x32xf32> to vector<8x32xf32>
    %80 = arith.addf %78, %79 : vector<8x32xf32>
    %c0_24 = arith.constant 0 : index
    %c0_25 = arith.constant 0 : index
    %81 = vector.load %arg4[%c0_24, %c0_25] : memref<8x32xf32, #tpu.memory_space<vmem>>, vector<8x32xf32>
    tpu.vector_store %arg4[%c0_24, %c0_25], %80 {strides = array<i32>} : memref<8x32xf32, #tpu.memory_space<vmem>>, vector<8x32xf32>,
    %82 = vector.broadcast %70 : vector<1x32xf32> to vector<8x32xf32>
    %83 = arith.mulf %62, %82 : vector<8x32xf32>
    %84 = vector.broadcast %71 : vector<1x32xf32> to vector<8x32xf32>
    %85 = arith.mulf %67, %84 : vector<8x32xf32>
    %86 = arith.addf %83, %85 : vector<8x32xf32>
    %87 = vector.broadcast %73 : vector<1x32xf32> to vector<8x32xf32>
    %88 = arith.addf %86, %87 : vector<8x32xf32>
    %c0_26 = arith.constant 0 : index
    %c0_27 = arith.constant 0 : index
    %89 = vector.load %arg5[%c0_26, %c0_27] : memref<8x32xf32, #tpu.memory_space<vmem>>, vector<8x32xf32>
    tpu.vector_store %arg5[%c0_26, %c0_27], %88 {strides = array<i32>} : memref<8x32xf32, #tpu.memory_space<vmem>>, vector<8x32xf32>,
    return
  }
  func.func @transform_0(%arg0: i32) -> (i32, i32) {
    %c0_i32 = arith.constant 0 : i32
    %c0_i32_0 = arith.constant 0 : i32
    return %arg0, %c0_i32 : i32, i32
  }
  func.func @transform_1(%arg0: i32) -> (i32, i32) {
    %c0_i32 = arith.constant 0 : i32
    %c0_i32_0 = arith.constant 0 : i32
    return %arg0, %c0_i32 : i32, i32
  }
  func.func @transform_2(%arg0: i32) -> (i32, i32) {
    %c0_i32 = arith.constant 0 : i32
    %c0_i32_0 = arith.constant 0 : i32
    %c0_i32_1 = arith.constant 0 : i32
    return %c0_i32, %c0_i32_0 : i32, i32
  }
  func.func @transform_3(%arg0: i32) -> (i32, i32) {
    %c0_i32 = arith.constant 0 : i32
    %c0_i32_0 = arith.constant 0 : i32
    return %arg0, %c0_i32 : i32, i32
  }
  func.func @transform_4(%arg0: i32) -> (i32, i32) {
    %c0_i32 = arith.constant 0 : i32
    %c0_i32_0 = arith.constant 0 : i32
    return %arg0, %c0_i32 : i32, i32
  }
}

</mosaic_0001>

<llo_original>
// kernel: tpu_custom_call.1
$region0: #{tpu_custom_call.1}
  #allocation0 [shape = 'u32[]', space=smem, size = 0x4, offset = 0x4, fixed_abs, tag = 'smem constant byte address 0x4 - core index']
  #allocation1 [shape = 'u32[144,128]{1,0:T(1,128)}', space=vmem, size = 0x12000, scoped, tag = 'internal scratch']
  %s0 = inlined_call_operand.hbm [shape: f32[16,32], index: 0, kind: input, shape index: {}]
  %s1 = inlined_call_operand.hbm [shape: f32[16,32], index: 1, kind: input, shape index: {}]
  %s2 = inlined_call_operand.hbm [shape: f32[6,32], index: 2, kind: input, shape index: {}]
  %s3 = inlined_call_operand.hbm [shape: f32[16,32], index: 3, kind: output, shape index: {0}]
  %s4 = inlined_call_operand.hbm [shape: f32[16,32], index: 4, kind: output, shape index: {1}]
  %5 = xla_tuple %s3, %s4
  %s6 = sld [smem:[#allocation0]]
  $region65: #{tpu_custom_call.1} parent=0
    _
  %s8 = ssub.s32 1, %s6
  %s9 = scalar_select 0, %s8, %s6
  $region1: #{tpu_custom_call.1} parent=0
    #allocation2 [shape = 'u8[8192]{0}', space=vmem, size = 0x2000, scoped, tag = 'input window, operand 0']
    #allocation3 [shape = 's32[2]{0}', space=sflag, size = 0x8, scoped, tag = 'scoped memory for tpu_custom_call.1']
    #allocation4 [shape = 's32[2]{0}', space=sflag, size = 0x8, scoped, tag = 'scoped memory for tpu_custom_call.1']
    #allocation5 [shape = 'u8[8192]{0}', space=vmem, size = 0x2000, scoped, tag = 'input window, operand 1']
    #allocation6 [shape = 's32[2]{0}', space=sflag, size = 0x8, scoped, tag = 'scoped memory for tpu_custom_call.1']
    #allocation7 [shape = 'u8[4096]{0}', space=vmem, size = 0x1000, scoped, tag = 'input window, operand 2, single buffered']
    #allocation8 [shape = 'u8[8192]{0}', space=vmem, size = 0x2000, scoped, tag = 'output window, operand 0']
    #allocation9 [shape = 'u8[8192]{0}', space=vmem, size = 0x2000, scoped, tag = 'output window, operand 1']
    #allocation10 [shape = 's32[2]{0}', space=sflag, size = 0x8, scoped, tag = 'scoped memory for tpu_custom_call.1']
    %10 = vsyncpa [#allocation3], 0
    %s11 = scalar_lea.sflag [#allocation3], 1
    %12 = vsyncpa %s11, 0
    %13 = vsyncpa [#allocation6], 0
    %s14 = scalar_lea.sflag [#allocation6], 1
    %15 = vsyncpa %s14, 0
    %16 = vsyncpa [#allocation4], 0
    %s17 = scalar_lea.sflag [#allocation4], 1
    %18 = vsyncpa %s17, 0
    %19 = vsyncpa [#allocation10], 0
    %s20 = scalar_lea.sflag [#allocation10], 1
    %21 = vsyncpa %s20, 0
    loop: start=0, step=1, limit=4
    $region2: #{tpu_custom_call.1} parent=1 // loop_pre_header
      _
    $region3: #{tpu_custom_call.1} parent=1 // loop_header
      %s23 = sphi 0, %s27
      %p24 = scmp.ge.s32.totalorder %s23, 4
      %s33 = sphi 0, %s35
      %s36 = sphi 0, %s33
      %s37 = sphi 0, %s36
      %s53 = sphi 0, %s37
      %s59 = sphi 0, %s61
      %s62 = sphi 0, %s59
      %s63 = sphi 0, %s62
      %s79 = sphi 0, %s63
      %s83 = sphi 0, %s83
      %s85 = sphi 0, %s83
      %s86 = sphi 0, %s85
      %s100 = sphi 0, %s86
      %s106 = sphi 0, %s108
      %s109 = sphi 0, %s106
      %s110 = sphi 0, %s109
      %s126 = sphi 0, %s110
      %s132 = sphi 0, %s134
      %s135 = sphi 0, %s132
      %s136 = sphi 0, %s135
      %s152 = sphi 0, %s136
    $region4: #{tpu_custom_call.1} parent=1 // loop_header_branch
      %26 = sbr.rel (%p24) target = $region8
    $region5: #{tpu_custom_call.1} parent=1 // loop_body
      %s28 = ssub.s32 %s23, 1
      %s29 = ssub.s32 %s23, 2
      %s30 = sadd.s32 %s23, 1
      %s31 = ssub.s32 %s23, %s30
      %p32 = scmp.eq.s32.totalorder %s31, 0
      %s34 = sadd.s32 %s33, 1
      %s35 = scalar_select %p32, %s33, %s34
      %p38 = pneg %p32
      %p39 = scmp.eq.s32.totalorder %s23, 1
      %p40 = por %p38, %p39
      %p41 = scmp.ne.s32.totalorder %s33, %s36
      %p42 = scmp.eq.s32.totalorder %s23, 0
      %p43 = por %p41, %p42
      %p44 = scmp.ne.s32.totalorder %s33, %s36
      %p45 = scmp.eq.s32.totalorder %s28, 1
      %p46 = por %p44, %p45
      %p47 = scmp.ne.s32.totalorder %s36, %s37
      %p48 = scmp.eq.s32.totalorder %s28, 0
      %p49 = por %p47, %p48
      %p50 = scmp.ne.s32.totalorder %s36, %s37
      %p51 = scmp.eq.s32.totalorder %s29, 1
      %p52 = por %p50, %p51
      %p54 = scmp.ne.s32.totalorder %s37, %s53
      %p55 = scmp.eq.s32.totalorder %s29, 0
      %p56 = por %p54, %p55
      %s57 = ssub.s32 %s23, %s30
      %p58 = scmp.eq.s32.totalorder %s57, 0
      %s60 = sadd.s32 %s59, 1
      %s61 = scalar_select %p58, %s59, %s60
      %p64 = pneg %p58
      %p65 = scmp.eq.s32.totalorder %s23, 1
      %p66 = por %p64, %p65
      %p67 = scmp.ne.s32.totalorder %s59, %s62
      %p68 = scmp.eq.s32.totalorder %s23, 0
      %p69 = por %p67, %p68
      %p70 = scmp.ne.s32.totalorder %s59, %s62
      %p71 = scmp.eq.s32.totalorder %s28, 1
      %p72 = por %p70, %p71
      %p73 = scmp.ne.s32.totalorder %s62, %s63
      %p74 = scmp.eq.s32.totalorder %s28, 0
      %p75 = por %p73, %p74
      %p76 = scmp.ne.s32.totalorder %s62, %s63
      %p77 = scmp.eq.s32.totalorder %s29, 1
      %p78 = por %p76, %p77
      %p80 = scmp.ne.s32.totalorder %s63, %s79
      %p81 = scmp.eq.s32.totalorder %s29, 0
      %p82 = por %p80, %p81
      %s84 = sadd.s32 %s83, 1
      %p87 = scmp.eq.s32.totalorder %s23, 1
      %p88 = scmp.ne.s32.totalorder %s83, %s85
      %p89 = scmp.eq.s32.totalorder %s23, 0
      %p90 = por %p88, %p89
      %p91 = scmp.ne.s32.totalorder %s83, %s85
      %p92 = scmp.eq.s32.totalorder %s28, 1
      %p93 = por %p91, %p92
      %p94 = scmp.ne.s32.totalorder %s85, %s86
      %p95 = scmp.eq.s32.totalorder %s28, 0
      %p96 = por %p94, %p95
      %p97 = scmp.ne.s32.totalorder %s85, %s86
      %p98 = scmp.eq.s32.totalorder %s29, 1
      %p99 = por %p97, %p98
      %p101 = scmp.ne.s32.totalorder %s86, %s100
      %p102 = scmp.eq.s32.totalorder %s29, 0
      %p103 = por %p101, %p102
      %s104 = ssub.s32 %s23, %s30
      %p105 = scmp.eq.s32.totalorder %s104, 0
      %s107 = sadd.s32 %s106, 1
      %s108 = scalar_select %p105, %s106, %s107
      %p111 = pneg %p105
      %p112 = scmp.eq.s32.totalorder %s23, 1
      %p113 = por %p111, %p112
      %p114 = scmp.ne.s32.totalorder %s106, %s109
      %p115 = scmp.eq.s32.totalorder %s23, 0
      %p116 = por %p114, %p115
      %p117 = scmp.ne.s32.totalorder %s106, %s109
      %p118 = scmp.eq.s32.totalorder %s28, 1
      %p119 = por %p117, %p118
      %p120 = scmp.ne.s32.totalorder %s109, %s110
      %p121 = scmp.eq.s32.totalorder %s28, 0
      %p122 = por %p120, %p121
      %p123 = scmp.ne.s32.totalorder %s109, %s110
      %p124 = scmp.eq.s32.totalorder %s29, 1
      %p125 = por %p123, %p124
      %p127 = scmp.ne.s32.totalorder %s110, %s126
      %p128 = scmp.eq.s32.totalorder %s29, 0
      %p129 = por %p127, %p128
      %s130 = ssub.s32 %s23, %s30
      %p131 = scmp.eq.s32.totalorder %s130, 0
      %s133 = sadd.s32 %s132, 1
      %s134 = scalar_select %p131, %s132, %s133
      %p137 = pneg %p131
      %p138 = scmp.eq.s32.totalorder %s23, 1
      %p139 = por %p137, %p138
      %p140 = scmp.ne.s32.totalorder %s132, %s135
      %p141 = scmp.eq.s32.totalorder %s23, 0
      %p142 = por %p140, %p141
      %p143 = scmp.ne.s32.totalorder %s132, %s135
      %p144 = scmp.eq.s32.totalorder %s28, 1
      %p145 = por %p143, %p144
      %p146 = scmp.ne.s32.totalorder %s135, %s136
      %p147 = scmp.eq.s32.totalorder %s28, 0
      %p148 = por %p146, %p147
      %p149 = scmp.ne.s32.totalorder %s135, %s136
      %p150 = scmp.eq.s32.totalorder %s29, 1
      %p151 = por %p149, %p150
      %p153 = scmp.ne.s32.totalorder %s136, %s152
      %p154 = scmp.eq.s32.totalorder %s29, 0
      %p155 = por %p153, %p154
      %p156 = scmp.le.s32.totalorder 1, %s23
      %p157 = scmp.lt.s32.totalorder %s23, 3
      %p158 = pnand %p156, %p157
      %p159 = pneg %p158
      // Predicated region
      $region9: #{tpu_custom_call.1} parent=5 // pred_check
        _
      $region10: #{tpu_custom_call.1} parent=5 // pred_check_branch
        %161 = sbr.rel (%p158) target = $region12
      $region11: #{tpu_custom_call.1} parent=5 // pred_region
        %s162 = ssub.s32 %s23, 1
        // Predicated region
        $region13: #{tpu_custom_call.1} parent=11 // pred_check
          %p163 = pneg %p96
        $region14: #{tpu_custom_call.1} parent=11 // pred_check_branch
          %165 = sbr.rel (%p163) target = $region16
        $region15: #{tpu_custom_call.1} parent=11 // pred_region
          %s167 = ssub.s32 128, 128
          %168 = vsyncadd [#allocation6], %s167
          %s170 = sshll.u32 [#allocation7], 4
          %s171 = int_to_ptr.vmem [resolvable:$true] %s170
          %173 = dma.hbm_to_vmem [thread:$0]  %s2, 128, %s171, [#allocation6]
        $region16: #{tpu_custom_call.1} parent=11 // pred_fallthru
          _
      $region12: #{tpu_custom_call.1} parent=5 // pred_fallthru
        _
      %p174 = scmp.lt.s32.totalorder %s23, 2
      // Predicated region
      $region17: #{tpu_custom_call.1} parent=5 // pred_check
        %p175 = pneg %p174
      $region18: #{tpu_custom_call.1} parent=5 // pred_check_branch
        %177 = sbr.rel (%p175) target = $region20
      $region19: #{tpu_custom_call.1} parent=5 // pred_region
        // Predicated region
        $region21: #{tpu_custom_call.1} parent=19 // pred_check
          %p178 = pneg %p43
        $region22: #{tpu_custom_call.1} parent=19 // pred_check_branch
          %180 = sbr.rel (%p178) target = $region24
        $region23: #{tpu_custom_call.1} parent=19 // pred_region
          %s181 = sand.u32 %s33, 1
          %s182 = scalar_lea.sflag [#allocation3], %s181
          %s183 = sand.u32 %s33, 1
          %s184 = smul.addr %s183, 8
          %s185 = scalar_lea.vmem [#allocation2], %s184
          %s187 = ssub.s32 128, 128
          %188 = vsyncadd %s182, %s187
          %s189 = smul.addr %s23, 128
          %s190 = scalar_lea.hbm %s0, %s189
          %s192 = sshll.u32 %s185, 4
          %s193 = int_to_ptr.vmem [resolvable:$true] %s192
          %195 = dma.hbm_to_vmem [thread:$0]  %s190, 128, %s193, %s182
        $region24: #{tpu_custom_call.1} parent=19 // pred_fallthru
          _
        // Predicated region
        $region25: #{tpu_custom_call.1} parent=19 // pred_check
          %p196 = pneg %p69
        $region26: #{tpu_custom_call.1} parent=19 // pred_check_branch
          %198 = sbr.rel (%p196) target = $region28
        $region27: #{tpu_custom_call.1} parent=19 // pred_region
          %s199 = sand.u32 %s23, 1
          %s200 = scalar_lea.sflag [#allocation6], %s199
          %s201 = sand.u32 %s59, 1
          %s202 = smul.addr %s201, 8
          %s203 = scalar_lea.vmem [#allocation5], %s202
          %s205 = ssub.s32 128, 128
          %206 = vsyncadd %s200, %s205
          %s207 = smul.addr %s23, 128
          %s208 = scalar_lea.hbm %s1, %s207
          %s210 = sshll.u32 %s203, 4
          %s211 = int_to_ptr.vmem [resolvable:$true] %s210
          %213 = dma.hbm_to_vmem [thread:$0]  %s208, 128, %s211, %s200
        $region28: #{tpu_custom_call.1} parent=19 // pred_fallthru
          _
      $region20: #{tpu_custom_call.1} parent=5 // pred_fallthru
        _
      %p214 = scmp.le.s32.totalorder 1, %s23
      %p215 = scmp.lt.s32.totalorder %s23, 3
      %p216 = pnand %p214, %p215
      %p217 = pneg %p216
      // Predicated region
      $region29: #{tpu_custom_call.1} parent=5 // pred_check
        _
      $region30: #{tpu_custom_call.1} parent=5 // pred_check_branch
        %219 = sbr.rel (%p216) target = $region32
      $region31: #{tpu_custom_call.1} parent=5 // pred_region
        %s220 = ssub.s32 %s23, 1
        %s221 = sand.u32 %s36, 1
        %s222 = scalar_lea.sflag [#allocation3], %s221
        %s223 = sand.u32 %s36, 1
        %s224 = smul.addr %s223, 8
        %s225 = scalar_lea.vmem [#allocation2], %s224
        // Predicated region
        $region33: #{tpu_custom_call.1} parent=31 // pred_check
          %p226 = pneg %p49
        $region34: #{tpu_custom_call.1} parent=31 // pred_check_branch
          %228 = sbr.rel (%p226) target = $region36
        $region35: #{tpu_custom_call.1} parent=31 // pred_region
          %229 = dma.done %s222, 128
        $region36: #{tpu_custom_call.1} parent=31 // pred_fallthru
          _
        %s230 = sand.u32 %s28, 1
        %s231 = scalar_lea.sflag [#allocation6], %s230
        %s232 = sand.u32 %s62, 1
        %s233 = smul.addr %s232, 8
        %s234 = scalar_lea.vmem [#allocation5], %s233
        // Predicated region
        $region37: #{tpu_custom_call.1} parent=31 // pred_check
          %p235 = pneg %p75
        $region38: #{tpu_custom_call.1} parent=31 // pred_check_branch
          %237 = sbr.rel (%p235) target = $region40
        $region39: #{tpu_custom_call.1} parent=31 // pred_region
          %238 = dma.done %s231, 128
        $region40: #{tpu_custom_call.1} parent=31 // pred_fallthru
          _
        // Predicated region
        $region41: #{tpu_custom_call.1} parent=31 // pred_check
          %p239 = pneg %p96
        $region42: #{tpu_custom_call.1} parent=31 // pred_check_branch
          %241 = sbr.rel (%p239) target = $region44
        $region43: #{tpu_custom_call.1} parent=31 // pred_region
          %242 = dma.done [#allocation6], 128
        $region44: #{tpu_custom_call.1} parent=31 // pred_fallthru
          _
        %s243 = sand.u32 %s36, 1
        %s244 = scalar_lea.sflag [#allocation3], %s243
        %s245 = sand.u32 %s36, 1
        %s246 = smul.addr %s245, 8
        %s247 = scalar_lea.vmem [#allocation2], %s246
        %p248 = pneg %p49
        %p249 = pneg %p46
        %s250 = sand.u32 %s28, 1
        %s251 = scalar_lea.sflag [#allocation6], %s250
        %s252 = sand.u32 %s62, 1
        %s253 = smul.addr %s252, 8
        %s254 = scalar_lea.vmem [#allocation5], %s253
        %p255 = pneg %p75
        %p256 = pneg %p72
        %p257 = pneg %p96
        %p258 = pneg %p93
        %p259 = pneg %p122
        %p260 = pneg %p119
        %s261 = sand.u32 %s109, 1
        %s262 = scalar_lea.sflag [#allocation4], %s261
        %s263 = sand.u32 %s109, 1
        %s264 = smul.addr %s263, 8
        %s265 = scalar_lea.vmem [#allocation8], %s264
        %p266 = pneg %p148
        %p267 = pneg %p145
        %s268 = sand.u32 %s135, 1
        %s269 = scalar_lea.sflag [#allocation10], %s268
        %s270 = sand.u32 %s135, 1
        %s271 = smul.addr %s270, 8
        %s272 = scalar_lea.vmem [#allocation9], %s271
        %v273 = vld [vmem:[%s225] sm:$0xff]
        %v274 = vld [vmem:[%s234] sm:$0xff]
        %vm275 = vcmask 261120
        %v276 = vsel %vm275, %v273, 0.0
        %277 = vadd.xlane.f32.xlu0 %v276
        %v278 = vpop.xlane.xlu0 %277
        %v279 = vsel %vm275, %v274, 0.0
        %280 = vadd.xlane.f32.xlu0 %v279
        %v281 = vpop.xlane.xlu0 %280
        %v282 = vmul.f32 %v273, %v273
        %v283 = vsel %vm275, %v282, 0.0
        %284 = vadd.xlane.f32.xlu0 %v283
        %v285 = vpop.xlane.xlu0 %284
        %v286 = vmul.f32 %v274, %v274
        %v287 = vsel %vm275, %v286, 0.0
        %288 = vadd.xlane.f32.xlu0 %v287
        %v289 = vpop.xlane.xlu0 %288
        %v290 = vmul.f32 %v273, %v274
        %v291 = vsel %vm275, %v290, 0.0
        %292 = vadd.xlane.f32.xlu0 %v291
        %v293 = vpop.xlane.xlu0 %292
        %v294 = vmul.f32 %v278, 0.03125
        %v295 = vmul.f32 %v281, 0.03125
        %v296 = vmul.f32 %v285, 0.03125
        %v297 = vmul.f32 %v294, %v294
        %v298 = vsub.f32 %v296, %v297
        %v299 = vadd.f32 %v298, 1e-05
        %v300 = vmul.f32 %v289, 0.03125
        %v301 = vmul.f32 %v295, %v295
        %v302 = vsub.f32 %v300, %v301
        %v303 = vadd.f32 %v302, 1e-05
        %v304 = vmul.f32 %v293, 0.03125
        %v305 = vmul.f32 %v294, %v295
        %v306 = vsub.f32 %v304, %v305
        %v307 = vmul.f32 %v299, %v303
        %v308 = vmul.f32 %v306, %v306
        %v309 = vsub.f32 %v307, %v308
        %v310 = vmax.f32 %v309, 1e-10
        %v311 = vrsqrt.pop %v310
        %v312 = vmul.f32 %v310, %v311
        %vm313 = vcmp.eq.f32.partialorder %v310, inf
        %v314 = vsel %vm313, %v310, %v312
        %vm315 = vcmp.eq.f32.partialorder %v310, 0.0
        %v316 = vand.u32 %v310, 2147483648
        %v317 = vsel %vm315, %v316, %v314
        %v318 = vadd.f32 %v299, %v303
        %v319 = vmul.f32 %v317, 2.0
        %v320 = vadd.f32 %v318, %v319
        %v321 = vmul.f32 %v310, %v320
        %v322 = vrsqrt.pop %v321
        %v323 = vadd.f32 %v303, %v317
        %v324 = vmul.f32 %v323, %v322
        %v325 = vadd.f32 %v299, %v317
        %v326 = vmul.f32 %v325, %v322
        %v327 = vsub.f32 0.0, %v306
        %v328 = vmul.f32 %v327, %v322
        %v329 = vsub.f32 %v273, %v294
        %v330 = vsub.f32 %v274, %v295
        %v331 = vmul.f32 %v329, %v324
        %v332 = vmul.f32 %v330, %v328
        %v333 = vadd.f32 %v331, %v332
        %v334 = vmul.f32 %v329, %v328
        %v335 = vmul.f32 %v330, %v326
        %v336 = vadd.f32 %v334, %v335
        %v337 = vld [vmem:[#allocation7] sm:$0x1]
        %v338 = vld [vmem:[#allocation7 + $0x1] sm:$0x1]
        %v339 = vld [vmem:[#allocation7 + $0x2] sm:$0x1]
        %v340 = vld [vmem:[#allocation7 + $0x3] sm:$0x1]
        %v341 = vld [vmem:[#allocation7 + $0x4] sm:$0x1]
        %v342 = vld [vmem:[#allocation7 + $0x5] sm:$0x1]
        %v343 = vlaneseq
        %v344 = vshrl.u32 %v343, 7
        %v345 = vsub.s32 0, %v344
        %v346 = vrot.slane %v337, %v345
        %v347 = vmul.f32 %v333, %v346
        %v348 = vlaneseq
        %v349 = vshrl.u32 %v348, 7
        %v350 = vsub.s32 0, %v349
        %v351 = vrot.slane %v338, %v350
        %v352 = vmul.f32 %v336, %v351
        %v353 = vadd.f32 %v347, %v352
        %v354 = vlaneseq
        %v355 = vshrl.u32 %v354, 7
        %v356 = vsub.s32 0, %v355
        %v357 = vrot.slane %v341, %v356
        %v358 = vadd.f32 %v353, %v357
        %359 = vst.msk [vmem:[%s265] sm:$0xff] %vm275, %v358
        %v360 = vlaneseq
        %v361 = vshrl.u32 %v360, 7
        %v362 = vsub.s32 0, %v361
        %v363 = vrot.slane %v339, %v362
        %v364 = vmul.f32 %v333, %v363
        %v365 = vlaneseq
        %v366 = vshrl.u32 %v365, 7
        %v367 = vsub.s32 0, %v366
        %v368 = vrot.slane %v340, %v367
        %v369 = vmul.f32 %v336, %v368
        %v370 = vadd.f32 %v364, %v369
        %v371 = vlaneseq
        %v372 = vshrl.u32 %v371, 7
        %v373 = vsub.s32 0, %v372
        %v374 = vrot.slane %v342, %v373
        %v375 = vadd.f32 %v370, %v374
        %376 = vst.msk [vmem:[%s272] sm:$0xff] %vm275, %v375
        %s377 = sand.u32 %s109, 1
        %s378 = scalar_lea.sflag [#allocation4], %s377
        %s379 = sand.u32 %s109, 1
        %s380 = smul.addr %s379, 8
        %s381 = scalar_lea.vmem [#allocation8], %s380
        %s382 = sand.u32 %s135, 1
        %s383 = scalar_lea.sflag [#allocation10], %s382
        %s384 = sand.u32 %s135, 1
        %s385 = smul.addr %s384, 8
        %s386 = scalar_lea.vmem [#allocation9], %s385
        // Predicated region
        $region45: #{tpu_custom_call.1} parent=31 // pred_check
          %p387 = pneg %p119
        $region46: #{tpu_custom_call.1} parent=31 // pred_check_branch
          %389 = sbr.rel (%p387) target = $region48
        $region47: #{tpu_custom_call.1} parent=31 // pred_region
          %s391 = ssub.s32 128, 128
          %392 = vsyncadd %s378, %s391
          %s393 = smul.addr %s28, 128
          %s394 = scalar_lea.hbm %s3, %s393
          %s396 = sshll.u32 %s381, 4
          %s397 = int_to_ptr.vmem [resolvable:$true] %s396
          %399 = dma.vmem_to_hbm [thread:$0]  %s397, 128, %s394, %s378
        $region48: #{tpu_custom_call.1} parent=31 // pred_fallthru
          _
        // Predicated region
        $region49: #{tpu_custom_call.1} parent=31 // pred_check
          %p400 = pneg %p145
        $region50: #{tpu_custom_call.1} parent=31 // pred_check_branch
          %402 = sbr.rel (%p400) target = $region52
        $region51: #{tpu_custom_call.1} parent=31 // pred_region
          %s404 = ssub.s32 128, 128
          %405 = vsyncadd %s383, %s404
          %s406 = smul.addr %s28, 128
          %s407 = scalar_lea.hbm %s4, %s406
          %s409 = sshll.u32 %s386, 4
          %s410 = int_to_ptr.vmem [resolvable:$true] %s409
          %412 = dma.vmem_to_hbm [thread:$0]  %s410, 128, %s407, %s383
        $region52: #{tpu_custom_call.1} parent=31 // pred_fallthru
          _
      $region32: #{tpu_custom_call.1} parent=5 // pred_fallthru
        _
      %p413 = scmp.le.s32.totalorder 2, %s23
      // Predicated region
      $region53: #{tpu_custom_call.1} parent=5 // pred_check
        %p414 = pneg %p413
      $region54: #{tpu_custom_call.1} parent=5 // pred_check_branch
        %416 = sbr.rel (%p414) target = $region56
      $region55: #{tpu_custom_call.1} parent=5 // pred_region
        %s417 = ssub.s32 %s23, 2
        // Predicated region
        $region57: #{tpu_custom_call.1} parent=55 // pred_check
          %p418 = pneg %p125
        $region58: #{tpu_custom_call.1} parent=55 // pred_check_branch
          %420 = sbr.rel (%p418) target = $region60
        $region59: #{tpu_custom_call.1} parent=55 // pred_region
          %s421 = sand.u32 %s110, 1
          %s422 = scalar_lea.sflag [#allocation4], %s421
          %s423 = sand.u32 %s110, 1
          %s424 = smul.addr %s423, 8
          %s425 = scalar_lea.vmem [#allocation8], %s424
          %426 = dma.done %s422, 128
        $region60: #{tpu_custom_call.1} parent=55 // pred_fallthru
          _
        // Predicated region
        $region61: #{tpu_custom_call.1} parent=55 // pred_check
          %p427 = pneg %p151
        $region62: #{tpu_custom_call.1} parent=55 // pred_check_branch
          %429 = sbr.rel (%p427) target = $region64
        $region63: #{tpu_custom_call.1} parent=55 // pred_region
          %s430 = sand.u32 %s136, 1
          %s431 = scalar_lea.sflag [#allocation10], %s430
          %s432 = sand.u32 %s136, 1
          %s433 = smul.addr %s432, 8
          %s434 = scalar_lea.vmem [#allocation9], %s433
          %435 = dma.done %s431, 128
        $region64: #{tpu_custom_call.1} parent=55 // pred_fallthru
          _
      $region56: #{tpu_custom_call.1} parent=5 // pred_fallthru
        _
    $region6: #{tpu_custom_call.1} parent=1 // loop_footer
      %s27 = sadd.s32 1, %s23
    $region7: #{tpu_custom_call.1} parent=1 // loop_footer_branch
      %22 = sbr.rel target = $region3
    $region8: #{tpu_custom_call.1} parent=1 // loop_exit
      _
    %436 = vsyncpa [#allocation3], 1
    %s437 = scalar_lea.sflag [#allocation3], 1
    %438 = vsyncpa %s437, 1
    %439 = vsyncpa [#allocation6], 1
    %s440 = scalar_lea.sflag [#allocation6], 1
    %441 = vsyncpa %s440, 1
    %442 = vsyncpa [#allocation4], 1
    %s443 = scalar_lea.sflag [#allocation4], 1
    %444 = vsyncpa %s443, 1
    %445 = vsyncpa [#allocation10], 1
    %s446 = scalar_lea.sflag [#allocation10], 1
    %447 = vsyncpa %s446, 1

</llo_original>
